<compile_context>
chip_gen: v6e
topology: v6e:2x2x1
jax: 0.10.0
libtpu: 0.0.40
codegen_flags: <defaults>
</compile_context>

<pallas_src>
from functools import partial

import jax
import jax.numpy as jnp
from jax.experimental import pallas as pl
from jax.experimental.pallas import tpu as pltpu


VMEM_LIMIT_BYTES = 48 * 1024 * 1024   # safe on v5e/v6e (128 MiB) and v7x (64 MiB)
MASK_VALUE = -1e30


def _pick_tile(seq_len, preferred=256):
    """Largest convenient q/kv tile that divides seq_len (full seq if tiny)."""
    if seq_len <= preferred:
        return seq_len
    for t in (preferred, 128, 64, 32, 16, 8):
        if seq_len % t == 0:
            return t
    return seq_len


# ----------------------------------------------------------------------------
# Kernel 1: fused QKV projection + neox RoPE, one grid step per (kv group, q block).
# ----------------------------------------------------------------------------
def _qkv_rope_kernel(hs_ref, w_ref, cos_ref, sin_ref, q_ref, k_ref, v_ref, *,
                     groups, head_dim, scaling):
    # hs_ref : (tq, H)              bf16
    # w_ref  : (H, (groups+2)*hd)   bf16, columns ordered [q_0..q_{g-1}, k, v]
    # cos/sin: (tq, hd)             f32
    # q_ref  : (tq, groups*hd)      bf16 (scaled, rotated)
    # k_ref  : (tq, hd)             bf16 (rotated)
    # v_ref  : (tq, hd)             bf16
    qkv = jnp.dot(hs_ref[...], w_ref[...],
                  preferred_element_type=jnp.float32)      # (tq, (groups+2)*hd) f32

    cos = cos_ref[...]
    sin = sin_ref[...]
    half = head_dim // 2

    def rope(x):
        # neox rotate_half(x) = [-x2, x1]; RoPE math kept in f32 on the VPU.
        x1 = x[:, :half]
        x2 = x[:, half:]
        rot = jnp.concatenate([-x2, x1], axis=1)
        return x * cos + rot * sin

    # Query heads of this kv group (attention scale folded into q here).
    for j in range(groups):
        sl = slice(j * head_dim, (j + 1) * head_dim)
        q_ref[:, sl] = (rope(qkv[:, sl]) * scaling).astype(q_ref.dtype)

    k_raw = qkv[:, groups * head_dim:(groups + 1) * head_dim]
    v_raw = qkv[:, (groups + 1) * head_dim:(groups + 2) * head_dim]
    k_ref[...] = rope(k_raw).astype(k_ref.dtype)
    v_ref[...] = v_raw.astype(v_ref.dtype)


# ----------------------------------------------------------------------------
# Kernel 2: causal flash attention (online softmax), GQA kv sharing.
# Grid: (num_heads, num_q_blocks, num_kv_blocks); kv axis is the reduction.
# ----------------------------------------------------------------------------
def _flash_attn_kernel(q_ref, k_ref, v_ref, o_ref, m_ref, l_ref, acc_ref, *,
                       block_q, block_kv):
    qi = pl.program_id(1)
    ki = pl.program_id(2)

    @pl.when(ki == 0)
    def _init():
        m_ref[...] = jnp.full(m_ref.shape, -jnp.inf, dtype=m_ref.dtype)
        l_ref[...] = jnp.zeros(l_ref.shape, dtype=l_ref.dtype)
        acc_ref[...] = jnp.zeros(acc_ref.shape, dtype=acc_ref.dtype)

    # Causal prefill: kv blocks strictly above the diagonal are fully masked; skip them.
    @pl.when(ki <= qi)
    def _compute():
        s = jax.lax.dot_general(q_ref[...], k_ref[...],
                                (((1,), (1,)), ((), ())),
                                preferred_element_type=jnp.float32)   # (tq, tk) f32
        row = qi * block_q + jax.lax.broadcasted_iota(jnp.int32, s.shape, 0)
        col = ki * block_kv + jax.lax.broadcasted_iota(jnp.int32, s.shape, 1)
        s = jnp.where(col <= row, s, MASK_VALUE)

        m_prev = m_ref[...]
        m_new = jnp.maximum(m_prev, jnp.max(s, axis=-1, keepdims=True))
        alpha = jnp.exp(m_prev - m_new)
        p = jnp.exp(s - m_new)                                        # f32 on VPU/EUP
        l_ref[...] = alpha * l_ref[...] + jnp.sum(p, axis=-1, keepdims=True)
        acc_ref[...] = alpha * acc_ref[...] + jnp.dot(
            p.astype(v_ref.dtype), v_ref[...],
            preferred_element_type=jnp.float32)
        m_ref[...] = m_new

    @pl.when(ki == pl.num_programs(2) - 1)
    def _finalize():
        inv_l = pl.reciprocal(l_ref[...], approx=True)
        o_ref[...] = (acc_ref[...] * inv_l).astype(o_ref.dtype)


# ----------------------------------------------------------------------------
# Kernel 3: output projection, one wide matmul per q block.
# ----------------------------------------------------------------------------
def _out_proj_kernel(x_ref, w_ref, o_ref):
    o_ref[...] = jnp.dot(x_ref[...], w_ref[...],
                         preferred_element_type=jnp.float32)


# ----------------------------------------------------------------------------
# Wrapper (weight rearrangement + RoPE tables are glue; hot path is Pallas).
# ----------------------------------------------------------------------------
def internlm2_attention_forward(positions, hidden_states, wqkv, wo, *,
                                num_heads, num_kv_heads, head_dim,
                                rope_theta=10000.0):
    seq_len, hidden = hidden_states.shape
    groups = num_heads // num_kv_heads
    nkv = num_kv_heads
    scaling = float(head_dim) ** -0.5
    q_width = num_heads * head_dim
    kv_width = num_kv_heads * head_dim

    # --- glue: per-kv-group fused weight slabs, bf16 for the MXU ---
    # wqkv rows are packed per kv group as [q_0 .. q_{groups-1}, k, v], head_dim rows each.
    w_group = wqkv.reshape(nkv, (groups + 2) * head_dim, hidden)
    w_group = jnp.transpose(w_group, (0, 2, 1)).astype(jnp.bfloat16)   # (nkv, H, (g+2)*hd)
    wo_t = jnp.transpose(wo).astype(jnp.bfloat16)                      # (nh*hd, H)
    hs_bf16 = hidden_states.astype(jnp.bfloat16)

    # --- glue: neox RoPE cos/sin tables (f32) ---
    inv_freq = 1.0 / (rope_theta ** (
        jnp.arange(0, head_dim, 2, dtype=jnp.float32) / head_dim))
    freqs = positions.astype(jnp.float32)[:, None] * inv_freq[None, :]  # (S, hd/2)
    cos_full = jnp.concatenate([jnp.cos(freqs), jnp.cos(freqs)], axis=-1)  # (S, hd)
    sin_full = jnp.concatenate([jnp.sin(freqs), jnp.sin(freqs)], axis=-1)  # (S, hd)

    block_q = _pick_tile(seq_len)
    block_kv = block_q
    n_q = seq_len // block_q
    n_kv = seq_len // block_kv

    # ------------------- Kernel 1: QKV projection + RoPE --------------------
    qkv_kernel = partial(_qkv_rope_kernel, groups=groups, head_dim=head_dim,
                         scaling=scaling)
    q_rot, k_rot, v_all = pl.pallas_call(
        qkv_kernel,
        out_shape=(
            jax.ShapeDtypeStruct((seq_len, q_width), jnp.bfloat16),
            jax.ShapeDtypeStruct((seq_len, kv_width), jnp.bfloat16),
            jax.ShapeDtypeStruct((seq_len, kv_width), jnp.bfloat16),
        ),
        grid=(nkv, n_q),
        in_specs=[
            pl.BlockSpec((block_q, hidden), lambda g, qi: (qi, 0)),           # hidden_states
            pl.BlockSpec((None, hidden, (groups + 2) * head_dim),
                         lambda g, qi: (g, 0, 0)),                            # fused group weights
            pl.BlockSpec((block_q, head_dim), lambda g, qi: (qi, 0)),         # cos
            pl.BlockSpec((block_q, head_dim), lambda g, qi: (qi, 0)),         # sin
        ],
        out_specs=(
            pl.BlockSpec((block_q, groups * head_dim), lambda g, qi: (qi, g)),  # q slab
            pl.BlockSpec((block_q, head_dim), lambda g, qi: (qi, g)),           # k
            pl.BlockSpec((block_q, head_dim), lambda g, qi: (qi, g)),           # v
        ),
        compiler_params=pltpu.CompilerParams(
            dimension_semantics=("parallel", "parallel"),
            vmem_limit_bytes=VMEM_LIMIT_BYTES),
    )(hs_bf16, w_group, cos_full, sin_full)

    # ------------------- Kernel 2: causal flash attention -------------------
    attn_kernel = partial(_flash_attn_kernel, block_q=block_q, block_kv=block_kv)
    attn_out = pl.pallas_call(
        attn_kernel,
        out_shape=jax.ShapeDtypeStruct((seq_len, q_width), jnp.bfloat16),
        grid=(num_heads, n_q, n_kv),
        in_specs=[
            pl.BlockSpec((block_q, head_dim), lambda h, qi, ki: (qi, h)),
            pl.BlockSpec((block_kv, head_dim), lambda h, qi, ki: (ki, h // groups)),
            pl.BlockSpec((block_kv, head_dim), lambda h, qi, ki: (ki, h // groups)),
        ],
        out_specs=pl.BlockSpec((block_q, head_dim), lambda h, qi, ki: (qi, h)),
        scratch_shapes=[
            pltpu.VMEM((block_q, 1), jnp.float32),          # running max
            pltpu.VMEM((block_q, 1), jnp.float32),          # running sum
            pltpu.VMEM((block_q, head_dim), jnp.float32),   # accumulator
        ],
        compiler_params=pltpu.CompilerParams(
            dimension_semantics=("parallel", "parallel", "arbitrary"),
            vmem_limit_bytes=VMEM_LIMIT_BYTES),
    )(q_rot, k_rot, v_all)

    # ------------------- Kernel 3: output projection (wo) -------------------
    out = pl.pallas_call(
        _out_proj_kernel,
        out_shape=jax.ShapeDtypeStruct((seq_len, hidden), jnp.float32),
        grid=(n_q,),
        in_specs=[
            pl.BlockSpec((block_q, q_width), lambda qi: (qi, 0)),
            pl.BlockSpec((q_width, hidden), lambda qi: (0, 0)),
        ],
        out_specs=pl.BlockSpec((block_q, hidden), lambda qi: (qi, 0)),
        compiler_params=pltpu.CompilerParams(
            dimension_semantics=("parallel",),
            vmem_limit_bytes=VMEM_LIMIT_BYTES),
    )(attn_out, wo_t)

    return out


# ----------------------------------------------------------------------------
# Pure-JAX reference (mirrors the PyTorch forward semantics, tp_size == 1).
# ----------------------------------------------------------------------------
def reference_forward(positions, hidden_states, wqkv, wo, *,
                      num_heads, num_kv_heads, head_dim, rope_theta=10000.0):
    seq_len, hidden = hidden_states.shape
    groups = num_heads // num_kv_heads
    scaling = float(head_dim) ** -0.5

    qkv = hidden_states @ wqkv.T                                         # (S, (nh+2nkv)*hd)
    qkv = qkv.reshape(seq_len, num_kv_heads, groups + 2, head_dim)
    q = qkv[:, :, :groups, :].reshape(seq_len, num_heads, head_dim)
    k = qkv[:, :, groups, :]                                             # (S, nkv, hd)
    v = qkv[:, :, groups + 1, :]                                         # (S, nkv, hd)

    inv_freq = 1.0 / (rope_theta ** (
        jnp.arange(0, head_dim, 2, dtype=jnp.float32) / head_dim))
    freqs = positions.astype(jnp.float32)[:, None] * inv_freq[None, :]
    cos = jnp.cos(freqs)[:, None, :]
    sin = jnp.sin(freqs)[:, None, :]

    def rope(x):
        x1, x2 = x[..., :head_dim // 2], x[..., head_dim // 2:]
        return jnp.concatenate([x1 * cos - x2 * sin, x2 * cos + x1 * sin], axis=-1)

    q = rope(q)
    k = rope(k)

    k_e = jnp.repeat(k, groups, axis=1)                                  # (S, nh, hd)
    v_e = jnp.repeat(v, groups, axis=1)

    s = jnp.einsum("qhd,khd->hqk", q, k_e) * scaling
    row = jnp.arange(seq_len)[:, None]
    col = jnp.arange(seq_len)[None, :]
    s = jnp.where(col <= row, s, -1e30)
    p = jax.nn.softmax(s, axis=-1)
    o = jnp.einsum("hqk,khd->qhd", p, v_e).reshape(seq_len, num_heads * head_dim)
    return o @ wo.T


if __name__ == "__main__":
    # Small InternLM2-like config.
    hidden_size = 512
    num_heads = 4
    num_kv_heads = 2
    head_dim = hidden_size // num_heads     # 128
    seq_len = 8
    rope_theta = 10000.0

    key = jax.random.PRNGKey(0)
    k1, k2, k3 = jax.random.split(key, 3)

    hidden_states = jax.random.normal(k1, (seq_len, hidden_size), dtype=jnp.float32)
    wqkv = 0.02 * jax.random.normal(
        k2, ((num_heads + 2 * num_kv_heads) * head_dim, hidden_size), dtype=jnp.float32)
    wo = 0.02 * jax.random.normal(
        k3, (hidden_size, num_heads * head_dim), dtype=jnp.float32)
    positions = jnp.arange(seq_len, dtype=jnp.int32)

    out = internlm2_attention_forward(
        positions, hidden_states, wqkv, wo,
        num_heads=num_heads, num_kv_heads=num_kv_heads,
        head_dim=head_dim, rope_theta=rope_theta)
    out = jax.block_until_ready(out)

    ref = jax.block_until_ready(reference_forward(
        positions, hidden_states, wqkv, wo,
        num_heads=num_heads, num_kv_heads=num_kv_heads,
        head_dim=head_dim, rope_theta=rope_theta))

    assert out.shape == (seq_len, hidden_size)
    max_err = float(jnp.max(jnp.abs(out - ref)))
    assert jnp.allclose(out, ref, rtol=2e-2, atol=2e-2), max_err
    print("KERNEL_OK")
</pallas_src>

<mosaic_0001>
module attributes {stable_mosaic.version = 11 : i64} {
  func.func @_qkv_rope_kernel(%arg0: i32, %arg1: i32, %arg2: memref<8x512xbf16, #tpu.memory_space<vmem>>, %arg3: memref<1x512x512xbf16, #tpu.memory_space<vmem>>, %arg4: memref<8x128xf32, #tpu.memory_space<vmem>>, %arg5: memref<8x128xf32, #tpu.memory_space<vmem>>, %arg6: memref<8x256xbf16, #tpu.memory_space<vmem>>, %arg7: memref<8x128xbf16, #tpu.memory_space<vmem>>, %arg8: memref<8x128xbf16, #tpu.memory_space<vmem>>) attributes {dimension_semantics = [#tpu.dimension_semantics<parallel>, #tpu.dimension_semantics<parallel>], iteration_bounds = array<i64: 2, 1>, scalar_prefetch = 0 : i64, scratch_operands = 0 : i64, tpu.core_type = #tpu.core_type<tc>, window_params = [{transform_indices = @transform_0, window_bounds = array<i64: 8, 512>}, {transform_indices = @transform_1, window_bounds = array<i64: 1, 512, 512>}, {transform_indices = @transform_2, window_bounds = array<i64: 8, 128>}, {transform_indices = @transform_3, window_bounds = array<i64: 8, 128>}, {transform_indices = @transform_4, window_bounds = array<i64: 8, 256>}, {transform_indices = @transform_5, window_bounds = array<i64: 8, 128>}, {transform_indices = @transform_6, window_bounds = array<i64: 8, 128>}]} {
    %c0 = arith.constant 0 : index
    %c0_0 = arith.constant 0 : index
    %0 = vector.load %arg2[%c0, %c0_0] : memref<8x512xbf16, #tpu.memory_space<vmem>>, vector<8x512xbf16>
    %c0_1 = arith.constant 0 : index
    %c0_2 = arith.constant 0 : index
    %c0_3 = arith.constant 0 : index
    %1 = vector.load %arg3[%c0_1, %c0_2, %c0_3] : memref<1x512x512xbf16, #tpu.memory_space<vmem>>, vector<1x512x512xbf16>
    %2 = vector.shape_cast %1 : vector<1x512x512xbf16> to vector<512x512xbf16>
    %cst = arith.constant dense<0.000000e+00> : vector<8x512xf32>
    %3 = tpu.matmul %0, %2, %cst {dimension_numbers = #tpu.dot_dimension_numbers<[1], [0], [0], [1], [0, 0, 1, 1], [], []>} : vector<8x512xbf16>, vector<512x512xbf16>, vector<8x512xf32> -> vector<8x512xf32>
    %c0_4 = arith.constant 0 : index
    %c0_5 = arith.constant 0 : index
    %4 = vector.load %arg4[%c0_4, %c0_5] : memref<8x128xf32, #tpu.memory_space<vmem>>, vector<8x128xf32>
    %c0_6 = arith.constant 0 : index
    %c0_7 = arith.constant 0 : index
    %5 = vector.load %arg5[%c0_6, %c0_7] : memref<8x128xf32, #tpu.memory_space<vmem>>, vector<8x128xf32>
    %6 = vector.extract_strided_slice %3 {offsets = [0, 0], sizes = [8, 128], strides = [1, 1]} : vector<8x512xf32> to vector<8x128xf32>
    %7 = vector.extract_strided_slice %6 {offsets = [0, 0], sizes = [8, 64], strides = [1, 1]} : vector<8x128xf32> to vector<8x64xf32>
    %8 = vector.extract_strided_slice %6 {offsets = [0, 64], sizes = [8, 64], strides = [1, 1]} : vector<8x128xf32> to vector<8x64xf32>
    %cst_8 = arith.constant 0.000000e+00 : f32
    %9 = vector.broadcast %cst_8 : f32 to vector<8x64xf32>
    %10 = arith.subf %9, %8 : vector<8x64xf32>
    %11 = tpu.concatenate %10, %7 in 1 : vector<8x64xf32>, vector<8x64xf32> -> vector<8x128xf32>
    %12 = arith.mulf %6, %4 : vector<8x128xf32>
    %13 = arith.mulf %11, %5 : vector<8x128xf32>
    %14 = arith.addf %12, %13 : vector<8x128xf32>
    %cst_9 = arith.constant 0.0883883461 : f32
    %15 = vector.broadcast %cst_9 : f32 to vector<8x128xf32>
    %16 = arith.mulf %14, %15 : vector<8x128xf32>
    %17 = arith.truncf %16 : vector<8x128xf32> to vector<8x128xbf16>
    %c0_10 = arith.constant 0 : index
    %c0_11 = arith.constant 0 : index
    %18 = vector.load %arg6[%c0_10, %c0_11] : memref<8x256xbf16, #tpu.memory_space<vmem>>, vector<8x128xbf16>
    tpu.vector_store %arg6[%c0_10, %c0_11], %17 {strides = array<i32>} : memref<8x256xbf16, #tpu.memory_space<vmem>>, vector<8x128xbf16>,
    %19 = vector.extract_strided_slice %3 {offsets = [0, 128], sizes = [8, 128], strides = [1, 1]} : vector<8x512xf32> to vector<8x128xf32>
    %20 = vector.extract_strided_slice %19 {offsets = [0, 0], sizes = [8, 64], strides = [1, 1]} : vector<8x128xf32> to vector<8x64xf32>
    %21 = vector.extract_strided_slice %19 {offsets = [0, 64], sizes = [8, 64], strides = [1, 1]} : vector<8x128xf32> to vector<8x64xf32>
    %cst_12 = arith.constant 0.000000e+00 : f32
    %22 = vector.broadcast %cst_12 : f32 to vector<8x64xf32>
    %23 = arith.subf %22, %21 : vector<8x64xf32>
    %24 = tpu.concatenate %23, %20 in 1 : vector<8x64xf32>, vector<8x64xf32> -> vector<8x128xf32>
    %25 = arith.mulf %19, %4 : vector<8x128xf32>
    %26 = arith.mulf %24, %5 : vector<8x128xf32>
    %27 = arith.addf %25, %26 : vector<8x128xf32>
    %cst_13 = arith.constant 0.0883883461 : f32
    %28 = vector.broadcast %cst_13 : f32 to vector<8x128xf32>
    %29 = arith.mulf %27, %28 : vector<8x128xf32>
    %30 = arith.truncf %29 : vector<8x128xf32> to vector<8x128xbf16>
    %c0_14 = arith.constant 0 : index
    %c128 = arith.constant 128 : index
    %31 = vector.load %arg6[%c0_14, %c128] : memref<8x256xbf16, #tpu.memory_space<vmem>>, vector<8x128xbf16>
    tpu.vector_store %arg6[%c0_14, %c128], %30 {strides = array<i32>} : memref<8x256xbf16, #tpu.memory_space<vmem>>, vector<8x128xbf16>,
    %32 = vector.extract_strided_slice %3 {offsets = [0, 256], sizes = [8, 128], strides = [1, 1]} : vector<8x512xf32> to vector<8x128xf32>
    %33 = vector.extract_strided_slice %3 {offsets = [0, 384], sizes = [8, 128], strides = [1, 1]} : vector<8x512xf32> to vector<8x128xf32>
    %34 = vector.extract_strided_slice %32 {offsets = [0, 0], sizes = [8, 64], strides = [1, 1]} : vector<8x128xf32> to vector<8x64xf32>
    %35 = vector.extract_strided_slice %32 {offsets = [0, 64], sizes = [8, 64], strides = [1, 1]} : vector<8x128xf32> to vector<8x64xf32>
    %cst_15 = arith.constant 0.000000e+00 : f32
    %36 = vector.broadcast %cst_15 : f32 to vector<8x64xf32>
    %37 = arith.subf %36, %35 : vector<8x64xf32>
    %38 = tpu.concatenate %37, %34 in 1 : vector<8x64xf32>, vector<8x64xf32> -> vector<8x128xf32>
    %39 = arith.mulf %32, %4 : vector<8x128xf32>
    %40 = arith.mulf %38, %5 : vector<8x128xf32>
    %41 = arith.addf %39, %40 : vector<8x128xf32>
    %42 = arith.truncf %41 : vector<8x128xf32> to vector<8x128xbf16>
    %c0_16 = arith.constant 0 : index
    %c0_17 = arith.constant 0 : index
    %43 = vector.load %arg7[%c0_16, %c0_17] : memref<8x128xbf16, #tpu.memory_space<vmem>>, vector<8x128xbf16>
    tpu.vector_store %arg7[%c0_16, %c0_17], %42 {strides = array<i32>} : memref<8x128xbf16, #tpu.memory_space<vmem>>, vector<8x128xbf16>,
    %44 = arith.truncf %33 : vector<8x128xf32> to vector<8x128xbf16>
    %c0_18 = arith.constant 0 : index
    %c0_19 = arith.constant 0 : index
    %45 = vector.load %arg8[%c0_18, %c0_19] : memref<8x128xbf16, #tpu.memory_space<vmem>>, vector<8x128xbf16>
    tpu.vector_store %arg8[%c0_18, %c0_19], %44 {strides = array<i32>} : memref<8x128xbf16, #tpu.memory_space<vmem>>, vector<8x128xbf16>,
    return
  }
  func.func @transform_0(%arg0: i32, %arg1: i32) -> (i32, i32) {
    %c0_i32 = arith.constant 0 : i32
    %c0_i32_0 = arith.constant 0 : i32
    return %arg1, %c0_i32 : i32, i32
  }
  func.func @transform_1(%arg0: i32, %arg1: i32) -> (i32, i32, i32) {
    %c0_i32 = arith.constant 0 : i32
    %c0_i32_0 = arith.constant 0 : i32
    %c0_i32_1 = arith.constant 0 : i32
    return %arg0, %c0_i32, %c0_i32_0 : i32, i32, i32
  }
  func.func @transform_2(%arg0: i32, %arg1: i32) -> (i32, i32) {
    %c0_i32 = arith.constant 0 : i32
    %c0_i32_0 = arith.constant 0 : i32
    return %arg1, %c0_i32 : i32, i32
  }
  func.func @transform_3(%arg0: i32, %arg1: i32) -> (i32, i32) {
    %c0_i32 = arith.constant 0 : i32
    %c0_i32_0 = arith.constant 0 : i32
    return %arg1, %c0_i32 : i32, i32
  }
  func.func @transform_4(%arg0: i32, %arg1: i32) -> (i32, i32) {
    %c0_i32 = arith.constant 0 : i32
    return %arg1, %arg0 : i32, i32
  }
  func.func @transform_5(%arg0: i32, %arg1: i32) -> (i32, i32) {
    %c0_i32 = arith.constant 0 : i32
    return %arg1, %arg0 : i32, i32
  }
  func.func @transform_6(%arg0: i32, %arg1: i32) -> (i32, i32) {
    %c0_i32 = arith.constant 0 : i32
    return %arg1, %arg0 : i32, i32
  }
}

</mosaic_0001>

<llo_original>
// kernel: tpu_custom_call.1
$region0: #{tpu_custom_call.1}
  #allocation0 [shape = 'u32[]', space=smem, size = 0x4, offset = 0x4, fixed_abs, tag = 'smem constant byte address 0x4 - core index']
  #allocation1 [shape = 'u32[144,128]{1,0:T(1,128)}', space=vmem, size = 0x12000, scoped, tag = 'internal scratch']
  %s0 = inlined_call_operand.hbm [shape: bf16[8,512], index: 0, kind: input, shape index: {}]
  %s1 = inlined_call_operand.hbm [shape: bf16[2,512,512], index: 1, kind: input, shape index: {}]
  %s2 = inlined_call_operand.hbm [shape: f32[8,128], index: 2, kind: input, shape index: {}]
  %s3 = inlined_call_operand.hbm [shape: f32[8,128], index: 3, kind: input, shape index: {}]
  %s4 = inlined_call_operand.hbm [shape: bf16[8,512], index: 4, kind: output, shape index: {0}]
  %s5 = inlined_call_operand.hbm [shape: bf16[8,256], index: 5, kind: output, shape index: {1}]
  %s6 = inlined_call_operand.hbm [shape: bf16[8,256], index: 6, kind: output, shape index: {2}]
  %7 = xla_tuple %s4, %s5, %s6
  %s8 = sld [smem:[#allocation0]]
  $region81: #{tpu_custom_call.1} parent=0
    _
  %s10 = ssub.s32 1, %s8
  %s11 = scalar_select 0, %s10, %s8
  $region1: #{tpu_custom_call.1} parent=0
    #allocation2 [shape = 'u8[8192]{0}', space=vmem, size = 0x2000, scoped, tag = 'input window, operand 0, single buffered']
    #allocation3 [shape = 's32[2]{0}', space=sflag, size = 0x8, scoped, tag = 'scoped memory for tpu_custom_call.1']
    #allocation4 [shape = 's32[2]{0}', space=sflag, size = 0x8, scoped, tag = 'scoped memory for tpu_custom_call.1']
    #allocation5 [shape = 'u8[1048576]{0}', space=vmem, size = 0x100000, scoped, tag = 'input window, operand 1']
    #allocation6 [shape = 's32[2]{0}', space=sflag, size = 0x8, scoped, tag = 'scoped memory for tpu_custom_call.1']
    #allocation7 [shape = 'u8[4096]{0}', space=vmem, size = 0x1000, scoped, tag = 'input window, operand 2, single buffered']
    #allocation8 [shape = 'u8[4096]{0}', space=vmem, size = 0x1000, scoped, tag = 'input window, operand 3, single buffered']
    #allocation9 [shape = 's32[1]{0}', space=sflag, size = 0x4, scoped, tag = 'scoped memory for tpu_custom_call.1']
    #allocation10 [shape = 'u8[8192]{0}', space=vmem, size = 0x2000, scoped, tag = 'output window, operand 0']
    #allocation11 [shape = 'u8[4096]{0}', space=vmem, size = 0x1000, scoped, tag = 'output window, operand 1']
    #allocation12 [shape = 's32[2]{0}', space=sflag, size = 0x8, scoped, tag = 'scoped memory for tpu_custom_call.1']
    #allocation13 [shape = 'u8[4096]{0}', space=vmem, size = 0x1000, scoped, tag = 'output window, operand 2']
    %12 = vsyncpa [#allocation3], 0
    %13 = vsyncpa [#allocation6], 0
    %s14 = scalar_lea.sflag [#allocation6], 1
    %15 = vsyncpa %s14, 0
    %16 = vsyncpa [#allocation9], 0
    %17 = vsyncpa [#allocation4], 0
    %s18 = scalar_lea.sflag [#allocation4], 1
    %19 = vsyncpa %s18, 0
    %20 = vsyncpa [#allocation12], 0
    %s21 = scalar_lea.sflag [#allocation12], 1
    %22 = vsyncpa %s21, 0
    loop: start=0, step=1, limit=4
    $region2: #{tpu_custom_call.1} parent=1 // loop_pre_header
      _
    $region3: #{tpu_custom_call.1} parent=1 // loop_header
      %s24 = sphi 0, %s28
      %p25 = scmp.ge.s32.totalorder %s24, 4
      %s31 = sphi 0, %s43
      %s32 = sphi 0, %s39
      %s33 = sphi 0, %s31
      %s34 = sphi 0, %s32
      %s35 = sphi 0, %s33
      %s36 = sphi 0, %s34
      %s46 = sphi 0, %s48
      %s49 = sphi 0, %s46
      %s50 = sphi 0, %s49
      %s66 = sphi 0, %s50
      %s72 = sphi 0, %s74
      %s75 = sphi 0, %s72
      %s76 = sphi 0, %s75
      %s92 = sphi 0, %s76
      %s98 = sphi 0, %s100
      %s101 = sphi 0, %s98
      %s102 = sphi 0, %s101
      %s118 = sphi 0, %s102
      %s124 = sphi 0, %s126
      %s127 = sphi 0, %s124
      %s128 = sphi 0, %s127
      %s144 = sphi 0, %s128
      %s152 = sphi 0, %s154
      %s155 = sphi 0, %s152
      %s156 = sphi 0, %s155
      %s172 = sphi 0, %s156
      %s180 = sphi 0, %s182
      %s183 = sphi 0, %s180
      %s184 = sphi 0, %s183
      %s200 = sphi 0, %s184
      %s208 = sphi 0, %s210
      %s211 = sphi 0, %s208
      %s212 = sphi 0, %s211
      %s228 = sphi 0, %s212
    $region4: #{tpu_custom_call.1} parent=1 // loop_header_branch
      %27 = sbr.rel (%p25) target = $region8
    $region5: #{tpu_custom_call.1} parent=1 // loop_body
      %s29 = ssub.s32 %s24, 1
      %s30 = ssub.s32 %s24, 2
      %s37 = sadd.s32 1, %s32
      %p38 = scmp.ge.s32.totalorder %s37, 1
      %s39 = scalar_select %p38, 0, %s37
      %s40 = sadd.s32 1, %s31
      %s41 = scalar_select %p38, %s40, %s31
      %p42 = scmp.ge.s32.totalorder %s41, 2
      %s43 = scalar_select %p42, 0, %s41
      %s44 = ssub.s32 %s32, %s39
      %p45 = scmp.eq.s32.totalorder %s44, 0
      %s47 = sadd.s32 %s46, 1
      %s48 = scalar_select %p45, %s46, %s47
      %p51 = pneg %p45
      %p52 = scmp.eq.s32.totalorder %s24, 1
      %p53 = por %p51, %p52
      %p54 = scmp.ne.s32.totalorder %s46, %s49
      %p55 = scmp.eq.s32.totalorder %s24, 0
      %p56 = por %p54, %p55
      %p57 = scmp.ne.s32.totalorder %s46, %s49
      %p58 = scmp.eq.s32.totalorder %s29, 1
      %p59 = por %p57, %p58
      %p60 = scmp.ne.s32.totalorder %s49, %s50
      %p61 = scmp.eq.s32.totalorder %s29, 0
      %p62 = por %p60, %p61
      %p63 = scmp.ne.s32.totalorder %s49, %s50
      %p64 = scmp.eq.s32.totalorder %s30, 1
      %p65 = por %p63, %p64
      %p67 = scmp.ne.s32.totalorder %s50, %s66
      %p68 = scmp.eq.s32.totalorder %s30, 0
      %p69 = por %p67, %p68
      %s70 = ssub.s32 %s31, %s43
      %p71 = scmp.eq.s32.totalorder %s70, 0
      %s73 = sadd.s32 %s72, 1
      %s74 = scalar_select %p71, %s72, %s73
      %p77 = pneg %p71
      %p78 = scmp.eq.s32.totalorder %s24, 1
      %p79 = por %p77, %p78
      %p80 = scmp.ne.s32.totalorder %s72, %s75
      %p81 = scmp.eq.s32.totalorder %s24, 0
      %p82 = por %p80, %p81
      %p83 = scmp.ne.s32.totalorder %s72, %s75
      %p84 = scmp.eq.s32.totalorder %s29, 1
      %p85 = por %p83, %p84
      %p86 = scmp.ne.s32.totalorder %s75, %s76
      %p87 = scmp.eq.s32.totalorder %s29, 0
      %p88 = por %p86, %p87
      %p89 = scmp.ne.s32.totalorder %s75, %s76
      %p90 = scmp.eq.s32.totalorder %s30, 1
      %p91 = por %p89, %p90
      %p93 = scmp.ne.s32.totalorder %s76, %s92
      %p94 = scmp.eq.s32.totalorder %s30, 0
      %p95 = por %p93, %p94
      %s96 = ssub.s32 %s32, %s39
      %p97 = scmp.eq.s32.totalorder %s96, 0
      %s99 = sadd.s32 %s98, 1
      %s100 = scalar_select %p97, %s98, %s99
      %p103 = pneg %p97
      %p104 = scmp.eq.s32.totalorder %s24, 1
      %p105 = por %p103, %p104
      %p106 = scmp.ne.s32.totalorder %s98, %s101
      %p107 = scmp.eq.s32.totalorder %s24, 0
      %p108 = por %p106, %p107
      %p109 = scmp.ne.s32.totalorder %s98, %s101
      %p110 = scmp.eq.s32.totalorder %s29, 1
      %p111 = por %p109, %p110
      %p112 = scmp.ne.s32.totalorder %s101, %s102
      %p113 = scmp.eq.s32.totalorder %s29, 0
      %p114 = por %p112, %p113
      %p115 = scmp.ne.s32.totalorder %s101, %s102
      %p116 = scmp.eq.s32.totalorder %s30, 1
      %p117 = por %p115, %p116
      %p119 = scmp.ne.s32.totalorder %s102, %s118
      %p120 = scmp.eq.s32.totalorder %s30, 0
      %p121 = por %p119, %p120
      %s122 = ssub.s32 %s32, %s39
      %p123 = scmp.eq.s32.totalorder %s122, 0
      %s125 = sadd.s32 %s124, 1
      %s126 = scalar_select %p123, %s124, %s125
      %p129 = pneg %p123
      %p130 = scmp.eq.s32.totalorder %s24, 1
      %p131 = por %p129, %p130
      %p132 = scmp.ne.s32.totalorder %s124, %s127
      %p133 = scmp.eq.s32.totalorder %s24, 0
      %p134 = por %p132, %p133
      %p135 = scmp.ne.s32.totalorder %s124, %s127
      %p136 = scmp.eq.s32.totalorder %s29, 1
      %p137 = por %p135, %p136
      %p138 = scmp.ne.s32.totalorder %s127, %s128
      %p139 = scmp.eq.s32.totalorder %s29, 0
      %p140 = por %p138, %p139
      %p141 = scmp.ne.s32.totalorder %s127, %s128
      %p142 = scmp.eq.s32.totalorder %s30, 1
      %p143 = por %p141, %p142
      %p145 = scmp.ne.s32.totalorder %s128, %s144
      %p146 = scmp.eq.s32.totalorder %s30, 0
      %p147 = por %p145, %p146
      %s148 = ssub.s32 %s32, %s39
      %s149 = ssub.s32 %s31, %s43
      %s150 = sor.u32 %s148, %s149
      %p151 = scmp.eq.s32.totalorder %s150, 0
      %s153 = sadd.s32 %s152, 1
      %s154 = scalar_select %p151, %s152, %s153
      %p157 = pneg %p151
      %p158 = scmp.eq.s32.totalorder %s24, 1
      %p159 = por %p157, %p158
      %p160 = scmp.ne.s32.totalorder %s152, %s155
      %p161 = scmp.eq.s32.totalorder %s24, 0
      %p162 = por %p160, %p161
      %p163 = scmp.ne.s32.totalorder %s152, %s155
      %p164 = scmp.eq.s32.totalorder %s29, 1
      %p165 = por %p163, %p164
      %p166 = scmp.ne.s32.totalorder %s155, %s156
      %p167 = scmp.eq.s32.totalorder %s29, 0
      %p168 = por %p166, %p167
      %p169 = scmp.ne.s32.totalorder %s155, %s156
      %p170 = scmp.eq.s32.totalorder %s30, 1
      %p171 = por %p169, %p170
      %p173 = scmp.ne.s32.totalorder %s156, %s172
      %p174 = scmp.eq.s32.totalorder %s30, 0
      %p175 = por %p173, %p174
      %s176 = ssub.s32 %s32, %s39
      %s177 = ssub.s32 %s31, %s43
      %s178 = sor.u32 %s176, %s177
      %p179 = scmp.eq.s32.totalorder %s178, 0
      %s181 = sadd.s32 %s180, 1
      %s182 = scalar_select %p179, %s180, %s181
      %p185 = pneg %p179
      %p186 = scmp.eq.s32.totalorder %s24, 1
      %p187 = por %p185, %p186
      %p188 = scmp.ne.s32.totalorder %s180, %s183
      %p189 = scmp.eq.s32.totalorder %s24, 0
      %p190 = por %p188, %p189
      %p191 = scmp.ne.s32.totalorder %s180, %s183
      %p192 = scmp.eq.s32.totalorder %s29, 1
      %p193 = por %p191, %p192
      %p194 = scmp.ne.s32.totalorder %s183, %s184
      %p195 = scmp.eq.s32.totalorder %s29, 0
      %p196 = por %p194, %p195
      %p197 = scmp.ne.s32.totalorder %s183, %s184
      %p198 = scmp.eq.s32.totalorder %s30, 1
      %p199 = por %p197, %p198
      %p201 = scmp.ne.s32.totalorder %s184, %s200
      %p202 = scmp.eq.s32.totalorder %s30, 0
      %p203 = por %p201, %p202
      %s204 = ssub.s32 %s32, %s39
      %s205 = ssub.s32 %s31, %s43
      %s206 = sor.u32 %s204, %s205
      %p207 = scmp.eq.s32.totalorder %s206, 0
      %s209 = sadd.s32 %s208, 1
      %s210 = scalar_select %p207, %s208, %s209
      %p213 = pneg %p207
      %p214 = scmp.eq.s32.totalorder %s24, 1
      %p215 = por %p213, %p214
      %p216 = scmp.ne.s32.totalorder %s208, %s211
      %p217 = scmp.eq.s32.totalorder %s24, 0
      %p218 = por %p216, %p217
      %p219 = scmp.ne.s32.totalorder %s208, %s211
      %p220 = scmp.eq.s32.totalorder %s29, 1
      %p221 = por %p219, %p220
      %p222 = scmp.ne.s32.totalorder %s211, %s212
      %p223 = scmp.eq.s32.totalorder %s29, 0
      %p224 = por %p222, %p223
      %p225 = scmp.ne.s32.totalorder %s211, %s212
      %p226 = scmp.eq.s32.totalorder %s30, 1
      %p227 = por %p225, %p226
      %p229 = scmp.ne.s32.totalorder %s212, %s228
      %p230 = scmp.eq.s32.totalorder %s30, 0
      %p231 = por %p229, %p230
      %p232 = scmp.le.s32.totalorder 1, %s24
      %p233 = scmp.lt.s32.totalorder %s24, 3
      %p234 = pnand %p232, %p233
      %p235 = pneg %p234
      // Predicated region
      $region9: #{tpu_custom_call.1} parent=5 // pred_check
        _
      $region10: #{tpu_custom_call.1} parent=5 // pred_check_branch
        %237 = sbr.rel (%p234) target = $region12
      $region11: #{tpu_custom_call.1} parent=5 // pred_region
        %s238 = ssub.s32 %s24, 1
        // Predicated region
        $region13: #{tpu_custom_call.1} parent=11 // pred_check
          %p239 = pneg %p62
        $region14: #{tpu_custom_call.1} parent=11 // pred_check_branch
          %241 = sbr.rel (%p239) target = $region16
        $region15: #{tpu_custom_call.1} parent=11 // pred_region
          %s243 = ssub.s32 256, 256
          %244 = vsyncadd [#allocation3], %s243
          %s245 = smul.addr %s34, 4
          %s246 = smul.addr %s245, 64
          %s247 = scalar_lea.hbm %s0, %s246
          %s249 = sshll.u32 [#allocation2], 4
          %s250 = int_to_ptr.vmem [resolvable:$true] %s249
          %252 = dma.hbm_to_vmem [thread:$0]  %s247, 256, %s250, [#allocation3]
        $region16: #{tpu_custom_call.1} parent=11 // pred_fallthru
          _
        // Predicated region
        $region17: #{tpu_custom_call.1} parent=11 // pred_check
          %p253 = pneg %p114
        $region18: #{tpu_custom_call.1} parent=11 // pred_check_branch
          %255 = sbr.rel (%p253) target = $region20
        $region19: #{tpu_custom_call.1} parent=11 // pred_region
          %s257 = ssub.s32 128, 128
          %258 = vsyncadd [#allocation6], %s257
          %s259 = smul.addr %s34, 128
          %s260 = scalar_lea.hbm %s2, %s259
          %s262 = sshll.u32 [#allocation7], 4
          %s263 = int_to_ptr.vmem [resolvable:$true] %s262
          %265 = dma.hbm_to_vmem [thread:$0]  %s260, 128, %s263, [#allocation6]
        $region20: #{tpu_custom_call.1} parent=11 // pred_fallthru
          _
        // Predicated region
        $region21: #{tpu_custom_call.1} parent=11 // pred_check
          %p266 = pneg %p140
        $region22: #{tpu_custom_call.1} parent=11 // pred_check_branch
          %268 = sbr.rel (%p266) target = $region24
        $region23: #{tpu_custom_call.1} parent=11 // pred_region
          %s270 = ssub.s32 128, 128
          %271 = vsyncadd [#allocation9], %s270
          %s272 = smul.addr %s34, 128
          %s273 = scalar_lea.hbm %s3, %s272
          %s275 = sshll.u32 [#allocation8], 4
          %s276 = int_to_ptr.vmem [resolvable:$true] %s275
          %278 = dma.hbm_to_vmem [thread:$0]  %s273, 128, %s276, [#allocation9]
        $region24: #{tpu_custom_call.1} parent=11 // pred_fallthru
          _
      $region12: #{tpu_custom_call.1} parent=5 // pred_fallthru
        _
      %p279 = scmp.lt.s32.totalorder %s24, 2
      // Predicated region
      $region25: #{tpu_custom_call.1} parent=5 // pred_check
        %p280 = pneg %p279
      $region26: #{tpu_custom_call.1} parent=5 // pred_check_branch
        %282 = sbr.rel (%p280) target = $region28
      $region27: #{tpu_custom_call.1} parent=5 // pred_region
        // Predicated region
        $region29: #{tpu_custom_call.1} parent=27 // pred_check
          %p283 = pneg %p82
        $region30: #{tpu_custom_call.1} parent=27 // pred_check_branch
          %285 = sbr.rel (%p283) target = $region32
        $region31: #{tpu_custom_call.1} parent=27 // pred_region
          %s286 = sand.u32 %s24, 1
          %s287 = scalar_lea.sflag [#allocation6], %s286
          %s288 = sand.u32 %s72, 1
          %s289 = smul.addr %s288, 1024
          %s290 = scalar_lea.vmem [#allocation5], %s289
          %s292 = ssub.s32 16384, 16384
          %293 = vsyncadd %s287, %s292
          %s294 = smul.addr %s31, 256
          %s295 = smul.addr %s294, 64
          %s296 = scalar_lea.hbm %s1, %s295
          %s297 = sshll.u32 %s290, 4
          %s298 = int_to_ptr.vmem [resolvable:$true] %s297
          %303 = dma.hbm_to_vmem [thread:$0]  %s296, 16384, %s298, %s287, 256, 256, 16
        $region32: #{tpu_custom_call.1} parent=27 // pred_fallthru
          _
      $region28: #{tpu_custom_call.1} parent=5 // pred_fallthru
        _
      %p304 = scmp.le.s32.totalorder 1, %s24
      %p305 = scmp.lt.s32.totalorder %s24, 3
      %p306 = pnand %p304, %p305
      %p307 = pneg %p306
      // Predicated region
      $region33: #{tpu_custom_call.1} parent=5 // pred_check
        _
      $region34: #{tpu_custom_call.1} parent=5 // pred_check_branch
        %309 = sbr.rel (%p306) target = $region36
      $region35: #{tpu_custom_call.1} parent=5 // pred_region
        %s310 = ssub.s32 %s24, 1
        // Predicated region
        $region37: #{tpu_custom_call.1} parent=35 // pred_check
          %p311 = pneg %p62
        $region38: #{tpu_custom_call.1} parent=35 // pred_check_branch
          %313 = sbr.rel (%p311) target = $region40
        $region39: #{tpu_custom_call.1} parent=35 // pred_region
          %314 = dma.done [#allocation3], 256
        $region40: #{tpu_custom_call.1} parent=35 // pred_fallthru
          _
        %s315 = sand.u32 %s29, 1
        %s316 = scalar_lea.sflag [#allocation6], %s315
        %s317 = sand.u32 %s75, 1
        %s318 = smul.addr %s317, 1024
        %s319 = scalar_lea.vmem [#allocation5], %s318
        // Predicated region
        $region41: #{tpu_custom_call.1} parent=35 // pred_check
          %p320 = pneg %p88
        $region42: #{tpu_custom_call.1} parent=35 // pred_check_branch
          %322 = sbr.rel (%p320) target = $region44
        $region43: #{tpu_custom_call.1} parent=35 // pred_region
          %323 = dma.done %s316, 16384
        $region44: #{tpu_custom_call.1} parent=35 // pred_fallthru
          _
        // Predicated region
        $region45: #{tpu_custom_call.1} parent=35 // pred_check
          %p324 = pneg %p114
        $region46: #{tpu_custom_call.1} parent=35 // pred_check_branch
          %326 = sbr.rel (%p324) target = $region48
        $region47: #{tpu_custom_call.1} parent=35 // pred_region
          %327 = dma.done [#allocation6], 128
        $region48: #{tpu_custom_call.1} parent=35 // pred_fallthru
          _
        // Predicated region
        $region49: #{tpu_custom_call.1} parent=35 // pred_check
          %p328 = pneg %p140
        $region50: #{tpu_custom_call.1} parent=35 // pred_check_branch
          %330 = sbr.rel (%p328) target = $region52
        $region51: #{tpu_custom_call.1} parent=35 // pred_region
          %331 = dma.done [#allocation9], 128
        $region52: #{tpu_custom_call.1} parent=35 // pred_fallthru
          _
        %p332 = pneg %p62
        %p333 = pneg %p59
        %s334 = sand.u32 %s29, 1
        %s335 = scalar_lea.sflag [#allocation6], %s334
        %s336 = sand.u32 %s75, 1
        %s337 = smul.addr %s336, 1024
        %s338 = scalar_lea.vmem [#allocation5], %s337
        %p339 = pneg %p88
        %p340 = pneg %p85
        %p341 = pneg %p114
        %p342 = pneg %p111
        %p343 = pneg %p140
        %p344 = pneg %p137
        %p345 = pneg %p168
        %p346 = pneg %p165
        %s347 = sand.u32 %s155, 1
        %s348 = scalar_lea.sflag [#allocation4], %s347
        %s349 = sand.u32 %s155, 1
        %s350 = smul.addr %s349, 8
        %s351 = scalar_lea.vmem [#allocation10], %s350
        %p352 = pneg %p196
        %p353 = pneg %p193
        %s354 = sand.u32 %s29, 1
        %s355 = scalar_lea.sflag [#allocation12], %s354
        %s356 = sand.u32 %s183, 1
        %s357 = smul.addr %s356, 4
        %s358 = scalar_lea.vmem [#allocation11], %s357
        %p359 = pneg %p224
        %p360 = pneg %p221
        %s361 = sand.u32 %s29, 1
        %s362 = scalar_lea.sflag [#allocation12], %s361
        %s363 = sand.u32 %s211, 1
        %s364 = smul.addr %s363, 4
        %s365 = scalar_lea.vmem [#allocation13], %s364
        %s366 = smul.u32 2, %s33
        %v367 = vld [vmem:[#allocation2] sm:$0xff]
        %v368 = vld [vmem:[#allocation2 + $0x8] sm:$0xff]
        %v369 = vld [vmem:[%s319] sm:$0xff]
        %v370 = vld [vmem:[%s319 + $0x8] sm:$0xff]
        %v371 = vld [vmem:[%s319 + $0x10] sm:$0xff]
        %v372 = vld [vmem:[%s319 + $0x18] sm:$0xff]
        %v373 = vld [vmem:[%s319 + $0x20] sm:$0xff]
        %v374 = vld [vmem:[%s319 + $0x28] sm:$0xff]
        %v375 = vld [vmem:[%s319 + $0x30] sm:$0xff]
        %v376 = vld [vmem:[%s319 + $0x38] sm:$0xff]
        %v377 = vld [vmem:[%s319 + $0x40] sm:$0xff]
        %v378 = vld [vmem:[%s319 + $0x48] sm:$0xff]
        %v379 = vld [vmem:[%s319 + $0x50] sm:$0xff]
        %v380 = vld [vmem:[%s319 + $0x58] sm:$0xff]
        %v381 = vld [vmem:[%s319 + $0x60] sm:$0xff]
        %v382 = vld [vmem:[%s319 + $0x68] sm:$0xff]
        %v383 = vld [vmem:[%s319 + $0x70] sm:$0xff]
        %v384 = vld [vmem:[%s319 + $0x78] sm:$0xff]
        %v385 = vld [vmem:[%s319 + $0x80] sm:$0xff]
        %v386 = vld [vmem:[%s319 + $0x88] sm:$0xff]
        %v387 = vld [vmem:[%s319 + $0x90] sm:$0xff]
        %v388 = vld [vmem:[%s319 + $0x98] sm:$0xff]
        %v389 = vld [vmem:[%s319 + $0xa0] sm:$0xff]
        %v390 = vld [vmem:[%s319 + $0xa8] sm:$0xff]
        %v391 = vld [vmem:[%s319 + $0xb0] sm:$0xff]
        %v392 = vld [vmem:[%s319 + $0xb8] sm:$0xff]
        %v393 = vld [vmem:[%s319 + $0xc0] sm:$0xff]
        %v394 = vld [vmem:[%s319 + $0xc8] sm:$0xff]
        %v395 = vld [vmem:[%s319 + $0xd0] sm:$0xff]
        %v396 = vld [vmem:[%s319 + $0xd8] sm:$0xff]
        %v397 = vld [vmem:[%s319 + $0xe0] sm:$0xff]
        %v398 = vld [vmem:[%s319 + $0xe8] sm:$0xff]
        %v399 = vld [vmem:[%s319 + $0xf0] sm:$0xff]
        %v400 = vld [vmem:[%s319 + $0xf8] sm:$0xff]
        %v401 = vld [vmem:[%s319 + $0x100] sm:$0xff]
        %v402 = vld [vmem:[%s319 + $0x108] sm:$0xff]
        %v403 = vld [vmem:[%s319 + $0x110] sm:$0xff]
        %v404 = vld [vmem:[%s319 + $0x118] sm:$0xff]
        %v405 = vld [vmem:[%s319 + $0x120] sm:$0xff]
        %v406 = vld [vmem:[%s319 + $0x128] sm:$0xff]
        %v407 = vld [vmem:[%s319 + $0x130] sm:$0xff]
        %v408 = vld [vmem:[%s319 + $0x138] sm:$0xff]
        %v409 = vld [vmem:[%s319 + $0x140] sm:$0xff]
        %v410 = vld [vmem:[%s319 + $0x148] sm:$0xff]
        %v411 = vld [vmem:[%s319 + $0x150] sm:$0xff]
        %v412 = vld [vmem:[%s319 + $0x158] sm:$0xff]
        %v413 = vld [vmem:[%s319 + $0x160] sm:$0xff]
        %v414 = vld [vmem:[%s319 + $0x168] sm:$0xff]
        %v415 = vld [vmem:[%s319 + $0x170] sm:$0xff]
        %v416 = vld [vmem:[%s319 + $0x178] sm:$0xff]
        %v417 = vld [vmem:[%s319 + $0x180] sm:$0xff]
        %v418 = vld [vmem:[%s319 + $0x188] sm:$0xff]
        %v419 = vld [vmem:[%s319 + $0x190] sm:$0xff]
        %v420 = vld [vmem:[%s319 + $0x198] sm:$0xff]
        %v421 = vld [vmem:[%s319 + $0x1a0] sm:$0xff]
        %v422 = vld [vmem:[%s319 + $0x1a8] sm:$0xff]
        %v423 = vld [vmem:[%s319 + $0x1b0] sm:$0xff]
        %v424 = vld [vmem:[%s319 + $0x1b8] sm:$0xff]
        %v425 = vld [vmem:[%s319 + $0x1c0] sm:$0xff]
        %v426 = vld [vmem:[%s319 + $0x1c8] sm:$0xff]
        %v427 = vld [vmem:[%s319 + $0x1d0] sm:$0xff]
        %v428 = vld [vmem:[%s319 + $0x1d8] sm:$0xff]
        %v429 = vld [vmem:[%s319 + $0x1e0] sm:$0xff]
        %v430 = vld [vmem:[%s319 + $0x1e8] sm:$0xff]
        %v431 = vld [vmem:[%s319 + $0x1f0] sm:$0xff]
        %v432 = vld [vmem:[%s319 + $0x1f8] sm:$0xff]
        %v433 = vld [vmem:[%s319 + $0x200] sm:$0xff]
        %v434 = vld [vmem:[%s319 + $0x208] sm:$0xff]
        %v435 = vld [vmem:[%s319 + $0x210] sm:$0xff]
        %v436 = vld [vmem:[%s319 + $0x218] sm:$0xff]
        %v437 = vld [vmem:[%s319 + $0x220] sm:$0xff]
        %v438 = vld [vmem:[%s319 + $0x228] sm:$0xff]
        %v439 = vld [vmem:[%s319 + $0x230] sm:$0xff]
        %v440 = vld [vmem:[%s319 + $0x238] sm:$0xff]
        %v441 = vld [vmem:[%s319 + $0x240] sm:$0xff]
        %v442 = vld [vmem:[%s319 + $0x248] sm:$0xff]
        %v443 = vld [vmem:[%s319 + $0x250] sm:$0xff]
        %v444 = vld [vmem:[%s319 + $0x258] sm:$0xff]
        %v445 = vld [vmem:[%s319 + $0x260] sm:$0xff]
        %v446 = vld [vmem:[%s319 + $0x268] sm:$0xff]
        %v447 = vld [vmem:[%s319 + $0x270] sm:$0xff]
        %v448 = vld [vmem:[%s319 + $0x278] sm:$0xff]
        %v449 = vld [vmem:[%s319 + $0x280] sm:$0xff]
        %v450 = vld [vmem:[%s319 + $0x288] sm:$0xff]
        %v451 = vld [vmem:[%s319 + $0x290] sm:$0xff]
        %v452 = vld [vmem:[%s319 + $0x298] sm:$0xff]
        %v453 = vld [vmem:[%s319 + $0x2a0] sm:$0xff]
        %v454 = vld [vmem:[%s319 + $0x2a8] sm:$0xff]
        %v455 = vld [vmem:[%s319 + $0x2b0] sm:$0xff]
        %v456 = vld [vmem:[%s319 + $0x2b8] sm:$0xff]
        %v457 = vld [vmem:[%s319 + $0x2c0] sm:$0xff]
        %v458 = vld [vmem:[%s319 + $0x2c8] sm:$0xff]
        %v459 = vld [vmem:[%s319 + $0x2d0] sm:$0xff]
        %v460 = vld [vmem:[%s319 + $0x2d8] sm:$0xff]
        %v461 = vld [vmem:[%s319 + $0x2e0] sm:$0xff]
        %v462 = vld [vmem:[%s319 + $0x2e8] sm:$0xff]
        %v463 = vld [vmem:[%s319 + $0x2f0] sm:$0xff]
        %v464 = vld [vmem:[%s319 + $0x2f8] sm:$0xff]
        %v465 = vld [vmem:[%s319 + $0x300] sm:$0xff]
        %v466 = vld [vmem:[%s319 + $0x308] sm:$0xff]
        %v467 = vld [vmem:[%s319 + $0x310] sm:$0xff]
        %v468 = vld [vmem:[%s319 + $0x318] sm:$0xff]
        %v469 = vld [vmem:[%s319 + $0x320] sm:$0xff]
        %v470 = vld [vmem:[%s319 + $0x328] sm:$0xff]
        %v471 = vld [vmem:[%s319 + $0x330] sm:$0xff]
        %v472 = vld [vmem:[%s319 + $0x338] sm:$0xff]
        %v473 = vld [vmem:[%s319 + $0x340] sm:$0xff]
        %v474 = vld [vmem:[%s319 + $0x348] sm:$0xff]
        %v475 = vld [vmem:[%s319 + $0x350] sm:$0xff]
        %v476 = vld [vmem:[%s319 + $0x358] sm:$0xff]
        %v477 = vld [vmem:[%s319 + $0x360] sm:$0xff]
        %v478 = vld [vmem:[%s319 + $0x368] sm:$0xff]
        %v479 = vld [vmem:[%s319 + $0x370] sm:$0xff]
        %v480 = vld [vmem:[%s319 + $0x378] sm:$0xff]
        %v481 = vld [vmem:[%s319 + $0x380] sm:$0xff]
        %v482 = vld [vmem:[%s319 + $0x388] sm:$0xff]
        %v483 = vld [vmem:[%s319 + $0x390] sm:$0xff]
        %v484 = vld [vmem:[%s319 + $0x398] sm:$0xff]
        %v485 = vld [vmem:[%s319 + $0x3a0] sm:$0xff]
        %v486 = vld [vmem:[%s319 + $0x3a8] sm:$0xff]
        %v487 = vld [vmem:[%s319 + $0x3b0] sm:$0xff]
        %v488 = vld [vmem:[%s319 + $0x3b8] sm:$0xff]
        %v489 = vld [vmem:[%s319 + $0x3c0] sm:$0xff]
        %v490 = vld [vmem:[%s319 + $0x3c8] sm:$0xff]
        %v491 = vld [vmem:[%s319 + $0x3d0] sm:$0xff]
        %v492 = vld [vmem:[%s319 + $0x3d8] sm:$0xff]
        %v493 = vld [vmem:[%s319 + $0x3e0] sm:$0xff]
        %v494 = vld [vmem:[%s319 + $0x3e8] sm:$0xff]
        %v495 = vld [vmem:[%s319 + $0x3f0] sm:$0xff]
        %v496 = vld [vmem:[%s319 + $0x3f8] sm:$0xff]
        %v499 = vunpack.c.l.b16 %v367
        %v500 = vunpack.c.h.b16 %v367
        %v501 = vunpack.c.l.b16 %v368
        %v502 = vunpack.c.h.b16 %v368
        %v503 = vpack.c.b16 %v499, %v499
        %v504 = vpack.c.b16 %v500, %v500
        %v505 = vpack.c.b16 %v501, %v501
        %v506 = vpack.c.b16 %v502, %v502
        %v639 = vunpack.c.l.b16 %v369
        %v640 = vunpack.c.h.b16 %v369
        %v641 = vunpack.c.l.b16 %v370
        %v642 = vunpack.c.h.b16 %v370
        %v643 = vunpack.c.l.b16 %v371
        %v644 = vunpack.c.h.b16 %v371
        %v645 = vunpack.c.l.b16 %v372
        %v646 = vunpack.c.h.b16 %v372
        %v647 = vunpack.c.l.b16 %v373
        %v648 = vunpack.c.h.b16 %v373
        %v649 = vunpack.c.l.b16 %v374
        %v650 = vunpack.c.h.b16 %v374
        %v651 = vunpack.c.l.b16 %v375
        %v652 = vunpack.c.h.b16 %v375
        %v653 = vunpack.c.l.b16 %v376
        %v654 = vunpack.c.h.b16 %v376
        %v655 = vunpack.c.l.b16 %v377
        %v656 = vunpack.c.h.b16 %v377
        %v657 = vunpack.c.l.b16 %v378
        %v658 = vunpack.c.h.b16 %v378
        %v659 = vunpack.c.l.b16 %v379
        %v660 = vunpack.c.h.b16 %v379
        %v661 = vunpack.c.l.b16 %v380
        %v662 = vunpack.c.h.b16 %v380
        %v663 = vunpack.c.l.b16 %v381
        %v664 = vunpack.c.h.b16 %v381
        %v665 = vunpack.c.l.b16 %v382
        %v666 = vunpack.c.h.b16 %v382
        %v667 = vunpack.c.l.b16 %v383
        %v668 = vunpack.c.h.b16 %v383
        %v669 = vunpack.c.l.b16 %v384
        %v670 = vunpack.c.h.b16 %v384
        %v671 = vunpack.c.l.b16 %v385
        %v672 = vunpack.c.h.b16 %v385
        %v673 = vunpack.c.l.b16 %v386
        %v674 = vunpack.c.h.b16 %v386
        %v675 = vunpack.c.l.b16 %v387
        %v676 = vunpack.c.h.b16 %v387
        %v677 = vunpack.c.l.b16 %v388
        %v678 = vunpack.c.h.b16 %v388
        %v679 = vunpack.c.l.b16 %v389
        %v680 = vunpack.c.h.b16 %v389
        %v681 = vunpack.c.l.b16 %v390
        %v682 = vunpack.c.h.b16 %v390
        %v683 = vunpack.c.l.b16 %v391
        %v684 = vunpack.c.h.b16 %v391
        %v685 = vunpack.c.l.b16 %v392
        %v686 = vunpack.c.h.b16 %v392
        %v687 = vunpack.c.l.b16 %v393
        %v688 = vunpack.c.h.b16 %v393
        %v689 = vunpack.c.l.b16 %v394
        %v690 = vunpack.c.h.b16 %v394
        %v691 = vunpack.c.l.b16 %v395
        %v692 = vunpack.c.h.b16 %v395
        %v693 = vunpack.c.l.b16 %v396
        %v694 = vunpack.c.h.b16 %v396
        %v695 = vunpack.c.l.b16 %v397
        %v696 = vunpack.c.h.b16 %v397
        %v697 = vunpack.c.l.b16 %v398
        %v698 = vunpack.c.h.b16 %v398
        %v699 = vunpack.c.l.b16 %v399
        %v700 = vunpack.c.h.b16 %v399
        %v701 = vunpack.c.l.b16 %v400
        %v702 = vunpack.c.h.b16 %v400
        %v703 = vunpack.c.l.b16 %v401
        %v704 = vunpack.c.h.b16 %v401
        %v705 = vunpack.c.l.b16 %v402
        %v706 = vunpack.c.h.b16 %v402
        %v707 = vunpack.c.l.b16 %v403
        %v708 = vunpack.c.h.b16 %v403
        %v709 = vunpack.c.l.b16 %v404
        %v710 = vunpack.c.h.b16 %v404
        %v711 = vunpack.c.l.b16 %v405
        %v712 = vunpack.c.h.b16 %v405
        %v713 = vunpack.c.l.b16 %v406
        %v714 = vunpack.c.h.b16 %v406
        %v715 = vunpack.c.l.b16 %v407
        %v716 = vunpack.c.h.b16 %v407
        %v717 = vunpack.c.l.b16 %v408
        %v718 = vunpack.c.h.b16 %v408
        %v719 = vunpack.c.l.b16 %v409
        %v720 = vunpack.c.h.b16 %v409
        %v721 = vunpack.c.l.b16 %v410
        %v722 = vunpack.c.h.b16 %v410
        %v723 = vunpack.c.l.b16 %v411
        %v724 = vunpack.c.h.b16 %v411
        %v725 = vunpack.c.l.b16 %v412
        %v726 = vunpack.c.h.b16 %v412
        %v727 = vunpack.c.l.b16 %v413
        %v728 = vunpack.c.h.b16 %v413
        %v729 = vunpack.c.l.b16 %v414
        %v730 = vunpack.c.h.b16 %v414
        %v731 = vunpack.c.l.b16 %v415
        %v732 = vunpack.c.h.b16 %v415
        %v733 = vunpack.c.l.b16 %v416
        %v734 = vunpack.c.h.b16 %v416
        %v735 = vunpack.c.l.b16 %v417
        %v736 = vunpack.c.h.b16 %v417
        %v737 = vunpack.c.l.b16 %v418
        %v738 = vunpack.c.h.b16 %v418
        %v739 = vunpack.c.l.b16 %v419
        %v740 = vunpack.c.h.b16 %v419
        %v741 = vunpack.c.l.b16 %v420
        %v742 = vunpack.c.h.b16 %v420
        %v743 = vunpack.c.l.b16 %v421
        %v744 = vunpack.c.h.b16 %v421
        %v745 = vunpack.c.l.b16 %v422
        %v746 = vunpack.c.h.b16 %v422
        %v747 = vunpack.c.l.b16 %v423
        %v748 = vunpack.c.h.b16 %v423
        %v749 = vunpack.c.l.b16 %v424
        %v750 = vunpack.c.h.b16 %v424
        %v751 = vunpack.c.l.b16 %v425
        %v752 = vunpack.c.h.b16 %v425
        %v753 = vunpack.c.l.b16 %v426
        %v754 = vunpack.c.h.b16 %v426
        %v755 = vunpack.c.l.b16 %v427
        %v756 = vunpack.c.h.b16 %v427
        %v757 = vunpack.c.l.b16 %v428
        %v758 = vunpack.c.h.b16 %v428
        %v759 = vunpack.c.l.b16 %v429
        %v760 = vunpack.c.h.b16 %v429
        %v761 = vunpack.c.l.b16 %v430
        %v762 = vunpack.c.h.b16 %v430
        %v763 = vunpack.c.l.b16 %v431
        %v764 = vunpack.c.h.b16 %v431
        %v765 = vunpack.c.l.b16 %v432
        %v766 = vunpack.c.h.b16 %v432
        %v767 = vunpack.c.l.b16 %v433
        %v768 = vunpack.c.h.b16 %v433
        %v769 = vunpack.c.l.b16 %v434
        %v770 = vunpack.c.h.b16 %v434
        %v771 = vunpack.c.l.b16 %v435
        %v772 = vunpack.c.h.b16 %v435
        %v773 = vunpack.c.l.b16 %v436
        %v774 = vunpack.c.h.b16 %v436
        %v775 = vunpack.c.l.b16 %v437
        %v776 = vunpack.c.h.b16 %v437
        %v777 = vunpack.c.l.b16 %v438
        %v778 = vunpack.c.h.b16 %v438
        %v779 = vunpack.c.l.b16 %v439
        %v780 = vunpack.c.h.b16 %v439
        %v781 = vunpack.c.l.b16 %v440
        %v782 = vunpack.c.h.b16 %v440
        %v783 = vunpack.c.l.b16 %v441
        %v784 = vunpack.c.h.b16 %v441
        %v785 = vunpack.c.l.b16 %v442
        %v786 = vunpack.c.h.b16 %v442
        %v787 = vunpack.c.l.b16 %v443
        %v788 = vunpack.c.h.b16 %v443
        %v789 = vunpack.c.l.b16 %v444
        %v790 = vunpack.c.h.b16 %v444
        %v791 = vunpack.c.l.b16 %v445
        %v792 = vunpack.c.h.b16 %v445
        %v793 = vunpack.c.l.b16 %v446
        %v794 = vunpack.c.h.b16 %v446
        %v795 = vunpack.c.l.b16 %v447
        %v796 = vunpack.c.h.b16 %v447
        %v797 = vunpack.c.l.b16 %v448
        %v798 = vunpack.c.h.b16 %v448
        %v799 = vunpack.c.l.b16 %v449
        %v800 = vunpack.c.h.b16 %v449
        %v801 = vunpack.c.l.b16 %v450
        %v802 = vunpack.c.h.b16 %v450
        %v803 = vunpack.c.l.b16 %v451
        %v804 = vunpack.c.h.b16 %v451
        %v805 = vunpack.c.l.b16 %v452
        %v806 = vunpack.c.h.b16 %v452
        %v807 = vunpack.c.l.b16 %v453
        %v808 = vunpack.c.h.b16 %v453
        %v809 = vunpack.c.l.b16 %v454
        %v810 = vunpack.c.h.b16 %v454
        %v811 = vunpack.c.l.b16 %v455
        %v812 = vunpack.c.h.b16 %v455
        %v813 = vunpack.c.l.b16 %v456
        %v814 = vunpack.c.h.b16 %v456
        %v815 = vunpack.c.l.b16 %v457
        %v816 = vunpack.c.h.b16 %v457
        %v817 = vunpack.c.l.b16 %v458
        %v818 = vunpack.c.h.b16 %v458
        %v819 = vunpack.c.l.b16 %v459
        %v820 = vunpack.c.h.b16 %v459
        %v821 = vunpack.c.l.b16 %v460
        %v822 = vunpack.c.h.b16 %v460
        %v823 = vunpack.c.l.b16 %v461
        %v824 = vunpack.c.h.b16 %v461
        %v825 = vunpack.c.l.b16 %v462
        %v826 = vunpack.c.h.b16 %v462
        %v827 = vunpack.c.l.b16 %v463
        %v828 = vunpack.c.h.b16 %v463
        %v829 = vunpack.c.l.b16 %v464
        %v830 = vunpack.c.h.b16 %v464
        %v831 = vunpack.c.l.b16 %v465
        %v832 = vunpack.c.h.b16 %v465
        %v833 = vunpack.c.l.b16 %v466
        %v834 = vunpack.c.h.b16 %v466
        %v835 = vunpack.c.l.b16 %v467
        %v836 = vunpack.c.h.b16 %v467
        %v837 = vunpack.c.l.b16 %v468
        %v838 = vunpack.c.h.b16 %v468
        %v839 = vunpack.c.l.b16 %v469
        %v840 = vunpack.c.h.b16 %v469
        %v841 = vunpack.c.l.b16 %v470
        %v842 = vunpack.c.h.b16 %v470
        %v843 = vunpack.c.l.b16 %v471
        %v844 = vunpack.c.h.b16 %v471
        %v845 = vunpack.c.l.b16 %v472
        %v846 = vunpack.c.h.b16 %v472
        %v847 = vunpack.c.l.b16 %v473
        %v848 = vunpack.c.h.b16 %v473
        %v849 = vunpack.c.l.b16 %v474
        %v850 = vunpack.c.h.b16 %v474
        %v851 = vunpack.c.l.b16 %v475
        %v852 = vunpack.c.h.b16 %v475
        %v853 = vunpack.c.l.b16 %v476
        %v854 = vunpack.c.h.b16 %v476
        %v855 = vunpack.c.l.b16 %v477
        %v856 = vunpack.c.h.b16 %v477
        %v857 = vunpack.c.l.b16 %v478
        %v858 = vunpack.c.h.b16 %v478
        %v859 = vunpack.c.l.b16 %v479
        %v860 = vunpack.c.h.b16 %v479
        %v861 = vunpack.c.l.b16 %v480
        %v862 = vunpack.c.h.b16 %v480
        %v863 = vunpack.c.l.b16 %v481
        %v864 = vunpack.c.h.b16 %v481
        %v865 = vunpack.c.l.b16 %v482
        %v866 = vunpack.c.h.b16 %v482
        %v867 = vunpack.c.l.b16 %v483
        %v868 = vunpack.c.h.b16 %v483
        %v869 = vunpack.c.l.b16 %v484
        %v870 = vunpack.c.h.b16 %v484
        %v871 = vunpack.c.l.b16 %v485
        %v872 = vunpack.c.h.b16 %v485
        %v873 = vunpack.c.l.b16 %v486
        %v874 = vunpack.c.h.b16 %v486
        %v875 = vunpack.c.l.b16 %v487
        %v876 = vunpack.c.h.b16 %v487
        %v877 = vunpack.c.l.b16 %v488
        %v878 = vunpack.c.h.b16 %v488
        %v879 = vunpack.c.l.b16 %v489
        %v880 = vunpack.c.h.b16 %v489
        %v881 = vunpack.c.l.b16 %v490
        %v882 = vunpack.c.h.b16 %v490
        %v883 = vunpack.c.l.b16 %v491
        %v884 = vunpack.c.h.b16 %v491
        %v885 = vunpack.c.l.b16 %v492
        %v886 = vunpack.c.h.b16 %v492
        %v887 = vunpack.c.l.b16 %v493
        %v888 = vunpack.c.h.b16 %v493
        %v889 = vunpack.c.l.b16 %v494
        %v890 = vunpack.c.h.b16 %v494
        %v891 = vunpack.c.l.b16 %v495
        %v892 = vunpack.c.h.b16 %v495
        %v893 = vunpack.c.l.b16 %v496
        %v894 = vunpack.c.h.b16 %v496
        %v895 = vpack.c.b16 %v643, %v639
        %v896 = vpack.c.b16 %v644, %v640
        %v897 = vpack.c.b16 %v645, %v641
        %v898 = vpack.c.b16 %v646, %v642
        %v899 = vpack.c.b16 %v651, %v647
        %v900 = vpack.c.b16 %v652, %v648
        %v901 = vpack.c.b16 %v653, %v649
        %v902 = vpack.c.b16 %v654, %v650
        %v903 = vpack.c.b16 %v659, %v655
        %v904 = vpack.c.b16 %v660, %v656
        %v905 = vpack.c.b16 %v661, %v657
        %v906 = vpack.c.b16 %v662, %v658
        %v907 = vpack.c.b16 %v667, %v663
        %v908 = vpack.c.b16 %v668, %v664
        %v909 = vpack.c.b16 %v669, %v665
        %v910 = vpack.c.b16 %v670, %v666
        %v911 = vpack.c.b16 %v675, %v671
        %v912 = vpack.c.b16 %v676, %v672
        %v913 = vpack.c.b16 %v677, %v673
        %v914 = vpack.c.b16 %v678, %v674
        %v915 = vpack.c.b16 %v683, %v679
        %v916 = vpack.c.b16 %v684, %v680
        %v917 = vpack.c.b16 %v685, %v681
        %v918 = vpack.c.b16 %v686, %v682
        %v919 = vpack.c.b16 %v691, %v687
        %v920 = vpack.c.b16 %v692, %v688
        %v921 = vpack.c.b16 %v693, %v689
        %v922 = vpack.c.b16 %v694, %v690
        %v923 = vpack.c.b16 %v699, %v695
        %v924 = vpack.c.b16 %v700, %v696
        %v925 = vpack.c.b16 %v701, %v697
        %v926 = vpack.c.b16 %v702, %v698
        %v927 = vpack.c.b16 %v707, %v703
        %v928 = vpack.c.b16 %v708, %v704
        %v929 = vpack.c.b16 %v709, %v705
        %v930 = vpack.c.b16 %v710, %v706
        %v931 = vpack.c.b16 %v715, %v711
        %v932 = vpack.c.b16 %v716, %v712
        %v933 = vpack.c.b16 %v717, %v713
        %v934 = vpack.c.b16 %v718, %v714
        %v935 = vpack.c.b16 %v723, %v719
        %v936 = vpack.c.b16 %v724, %v720
        %v937 = vpack.c.b16 %v725, %v721
        %v938 = vpack.c.b16 %v726, %v722
        %v939 = vpack.c.b16 %v731, %v727
        %v940 = vpack.c.b16 %v732, %v728
        %v941 = vpack.c.b16 %v733, %v729
        %v942 = vpack.c.b16 %v734, %v730
        %v943 = vpack.c.b16 %v739, %v735
        %v944 = vpack.c.b16 %v740, %v736
        %v945 = vpack.c.b16 %v741, %v737
        %v946 = vpack.c.b16 %v742, %v738
        %v947 = vpack.c.b16 %v747, %v743
        %v948 = vpack.c.b16 %v748, %v744
        %v949 = vpack.c.b16 %v749, %v745
        %v950 = vpack.c.b16 %v750, %v746
        %v951 = vpack.c.b16 %v755, %v751
        %v952 = vpack.c.b16 %v756, %v752
        %v953 = vpack.c.b16 %v757, %v753
        %v954 = vpack.c.b16 %v758, %v754
        %v955 = vpack.c.b16 %v763, %v759
        %v956 = vpack.c.b16 %v764, %v760
        %v957 = vpack.c.b16 %v765, %v761
        %v958 = vpack.c.b16 %v766, %v762
        %v959 = vpack.c.b16 %v771, %v767
        %v960 = vpack.c.b16 %v772, %v768
        %v961 = vpack.c.b16 %v773, %v769
        %v962 = vpack.c.b16 %v774, %v770
        %v963 = vpack.c.b16 %v779, %v775
        %v964 = vpack.c.b16 %v780, %v776
        %v965 = vpack.c.b16 %v781, %v777
        %v966 = vpack.c.b16 %v782, %v778
        %v967 = vpack.c.b16 %v787, %v783
        %v968 = vpack.c.b16 %v788, %v784
        %v969 = vpack.c.b16 %v789, %v785
        %v970 = vpack.c.b16 %v790, %v786
        %v971 = vpack.c.b16 %v795, %v791
        %v972 = vpack.c.b16 %v796, %v792
        %v973 = vpack.c.b16 %v797, %v793
        %v974 = vpack.c.b16 %v798, %v794
        %v975 = vpack.c.b16 %v803, %v799
        %v976 = vpack.c.b16 %v804, %v800
        %v977 = vpack.c.b16 %v805, %v801
        %v978 = vpack.c.b16 %v806, %v802
        %v979 = vpack.c.b16 %v811, %v807
        %v980 = vpack.c.b16 %v812, %v808
        %v981 = vpack.c.b16 %v813, %v809
        %v982 = vpack.c.b16 %v814, %v810
        %v983 = vpack.c.b16 %v819, %v815
        %v984 = vpack.c.b16 %v820, %v816
        %v985 = vpack.c.b16 %v821, %v817
        %v986 = vpack.c.b16 %v822, %v818
        %v987 = vpack.c.b16 %v827, %v823
        %v988 = vpack.c.b16 %v828, %v824
        %v989 = vpack.c.b16 %v829, %v825
        %v990 = vpack.c.b16 %v830, %v826
        %v991 = vpack.c.b16 %v835, %v831
        %v992 = vpack.c.b16 %v836, %v832
        %v993 = vpack.c.b16 %v837, %v833
        %v994 = vpack.c.b16 %v838, %v834
        %v995 = vpack.c.b16 %v843, %v839
        %v996 = vpack.c.b16 %v844, %v840
        %v997 = vpack.c.b16 %v845, %v841
        %v998 = vpack.c.b16 %v846, %v842
        %v999 = vpack.c.b16 %v851, %v847
        %v1000 = vpack.c.b16 %v852, %v848
        %v1001 = vpack.c.b16 %v853, %v849
        %v1002 = vpack.c.b16 %v854, %v850
        %v1003 = vpack.c.b16 %v859, %v855
        %v1004 = vpack.c.b16 %v860, %v856
        %v1005 = vpack.c.b16 %v861, %v857
        %v1006 = vpack.c.b16 %v862, %v858
        %v1007 = vpack.c.b16 %v867, %v863
        %v1008 = vpack.c.b16 %v868, %v864
        %v1009 = vpack.c.b16 %v869, %v865
        %v1010 = vpack.c.b16 %v870, %v866
        %v1011 = vpack.c.b16 %v875, %v871
        %v1012 = vpack.c.b16 %v876, %v872
        %v1013 = vpack.c.b16 %v877, %v873
        %v1014 = vpack.c.b16 %v878, %v874
        %v1015 = vpack.c.b16 %v883, %v879
        %v1016 = vpack.c.b16 %v884, %v880
        %v1017 = vpack.c.b16 %v885, %v881
        %v1018 = vpack.c.b16 %v886, %v882
        %v1019 = vpack.c.b16 %v891, %v887
        %v1020 = vpack.c.b16 %v892, %v888
        %v1021 = vpack.c.b16 %v893, %v889
        %v1022 = vpack.c.b16 %v894, %v890
        %1151 = vmatprep.subr.bf16.mxu0 %v924
        %1152 = vmatpush1.bf16.msra.mxu0 %v923
        %1153 = vmatprep.subr.bf16.mxu0 %v920
        %1154 = vmatpush1.bf16.msra.mxu0 %v919
        %1155 = vmatprep.subr.bf16.mxu0 %v916
        %1156 = vmatpush1.bf16.msra.mxu0 %v915
        %1157 = vmatprep.subr.bf16.mxu0 %v912
        %1158 = vmatpush1.bf16.msra.mxu0 %v911
        %1159 = vmatprep.subr.bf16.mxu0 %v908
        %1160 = vmatpush1.bf16.msra.mxu0 %v907
        %1161 = vmatprep.subr.bf16.mxu0 %v904
        %1162 = vmatpush1.bf16.msra.mxu0 %v903
        %1163 = vmatprep.subr.bf16.mxu0 %v900
        %1164 = vmatpush1.bf16.msra.mxu0 %v899
        %1165 = vmatprep.subr.bf16.mxu0 %v896
        %1166 = vmatpush1.bf16.msra.mxu0 %v895
        %1167 = vmatprep.subr.bf16.mxu0 %v956
        %1168 = vmatpush2.bf16.msra.mxu0 %v955
        %1169 = vmatprep.subr.bf16.mxu0 %v952
        %1170 = vmatpush2.bf16.msra.mxu0 %v951
        %1171 = vmatprep.subr.bf16.mxu0 %v948
        %1172 = vmatpush2.bf16.msra.mxu0 %v947
        %1173 = vmatprep.subr.bf16.mxu0 %v944
        %1174 = vmatpush2.bf16.msra.mxu0 %v943
        %1175 = vmatprep.subr.bf16.mxu0 %v940
        %1176 = vmatpush2.bf16.msra.mxu0 %v939
        %1177 = vmatprep.subr.bf16.mxu0 %v936
        %1178 = vmatpush2.bf16.msra.mxu0 %v935
        %1179 = vmatprep.subr.bf16.mxu0 %v932
        %1180 = vmatpush2.bf16.msra.mxu0 %v931
        %1181 = vmatprep.subr.bf16.mxu0 %v928
        %1182 = vmatpush2.bf16.msra.mxu0 %v927
        %1183 = vmatprep.mubr.bf16.mxu0 %v504
        %1184 = vmatmul.mubr.bf16.gmra.mxu0 %v503
        %v1185 = vpop.f32.mrf.mxu0
        %v1186 = vadd.f32 0.0, %v1185
        %v1187 = vpop.f32.mrf.mxu0
        %v1188 = vadd.f32 0.0, %v1187
        %v1189 = vpop.f32.mrf.mxu0
        %v1190 = vpop.f32.mrf.mxu0
        %1191 = vdwg.mxu0
        %1192 = vmatprep.subr.bf16.mxu0 %v988
        %1193 = vmatpush1.bf16.msra.mxu0 %v987
        %1194 = vmatprep.subr.bf16.mxu0 %v984
        %1195 = vmatpush1.bf16.msra.mxu0 %v983
        %1196 = vmatprep.subr.bf16.mxu0 %v980
        %1197 = vmatpush1.bf16.msra.mxu0 %v979
        %1198 = vmatprep.subr.bf16.mxu0 %v976
        %1199 = vmatpush1.bf16.msra.mxu0 %v975
        %1200 = vmatprep.subr.bf16.mxu0 %v972
        %1201 = vmatpush1.bf16.msra.mxu0 %v971
        %1202 = vmatprep.subr.bf16.mxu0 %v968
        %1203 = vmatpush1.bf16.msra.mxu0 %v967
        %1204 = vmatprep.subr.bf16.mxu0 %v964
        %1205 = vmatpush1.bf16.msra.mxu0 %v963
        %1206 = vmatprep.subr.bf16.mxu0 %v960
        %1207 = vmatpush1.bf16.msra.mxu0 %v959
        %1208 = vmatprep.subr.bf16.mxu0 %v1020
        %1209 = vmatpush2.bf16.msra.mxu0 %v1019
        %1210 = vmatprep.subr.bf16.mxu0 %v1016
        %1211 = vmatpush2.bf16.msra.mxu0 %v1015
        %1212 = vmatprep.subr.bf16.mxu0 %v1012
        %1213 = vmatpush2.bf16.msra.mxu0 %v1011
        %1214 = vmatprep.subr.bf16.mxu0 %v1008
        %1215 = vmatpush2.bf16.msra.mxu0 %v1007
        %1216 = vmatprep.subr.bf16.mxu0 %v1004
        %1217 = vmatpush2.bf16.msra.mxu0 %v1003
        %1218 = vmatprep.subr.bf16.mxu0 %v1000
        %1219 = vmatpush2.bf16.msra.mxu0 %v999
        %1220 = vmatprep.subr.bf16.mxu0 %v996
        %1221 = vmatpush2.bf16.msra.mxu0 %v995
        %1222 = vmatprep.subr.bf16.mxu0 %v992
        %1223 = vmatpush2.bf16.msra.mxu0 %v991
        %1224 = vmatprep.mubr.bf16.mxu0 %v506
        %1225 = vmatmul.mubr.bf16.gmra.mxu0 %v505
        %v1226 = vpop.f32.mrf.mxu0
        %v1227 = vadd.f32 %v1186, %v1226
        %v1228 = vpop.f32.mrf.mxu0
        %v1229 = vadd.f32 %v1188, %v1228
        %v1230 = vpop.f32.mrf.mxu0
        %v1231 = vpop.f32.mrf.mxu0
        %1232 = vdwg.mxu0
        %1233 = vmatprep.subr.bf16.mxu0 %v926
        %1234 = vmatpush1.bf16.msra.mxu0 %v925
        %1235 = vmatprep.subr.bf16.mxu0 %v922
        %1236 = vmatpush1.bf16.msra.mxu0 %v921
        %1237 = vmatprep.subr.bf16.mxu0 %v918
        %1238 = vmatpush1.bf16.msra.mxu0 %v917
        %1239 = vmatprep.subr.bf16.mxu0 %v914
        %1240 = vmatpush1.bf16.msra.mxu0 %v913
        %1241 = vmatprep.subr.bf16.mxu0 %v910
        %1242 = vmatpush1.bf16.msra.mxu0 %v909
        %1243 = vmatprep.subr.bf16.mxu0 %v906
        %1244 = vmatpush1.bf16.msra.mxu0 %v905
        %1245 = vmatprep.subr.bf16.mxu0 %v902
        %1246 = vmatpush1.bf16.msra.mxu0 %v901
        %1247 = vmatprep.subr.bf16.mxu0 %v898
        %1248 = vmatpush1.bf16.msra.mxu0 %v897
        %1249 = vmatprep.subr.bf16.mxu0 %v958
        %1250 = vmatpush2.bf16.msra.mxu0 %v957
        %1251 = vmatprep.subr.bf16.mxu0 %v954
        %1252 = vmatpush2.bf16.msra.mxu0 %v953
        %1253 = vmatprep.subr.bf16.mxu0 %v950
        %1254 = vmatpush2.bf16.msra.mxu0 %v949
        %1255 = vmatprep.subr.bf16.mxu0 %v946
        %1256 = vmatpush2.bf16.msra.mxu0 %v945
        %1257 = vmatprep.subr.bf16.mxu0 %v942
        %1258 = vmatpush2.bf16.msra.mxu0 %v941
        %1259 = vmatprep.subr.bf16.mxu0 %v938
        %1260 = vmatpush2.bf16.msra.mxu0 %v937
        %1261 = vmatprep.subr.bf16.mxu0 %v934
        %1262 = vmatpush2.bf16.msra.mxu0 %v933
        %1263 = vmatprep.subr.bf16.mxu0 %v930
        %1264 = vmatpush2.bf16.msra.mxu0 %v929
        %1265 = vmatprep.mubr.bf16.mxu0 %v504
        %1266 = vmatmul.mubr.bf16.gmra.mxu0 %v503
        %v1267 = vpop.f32.mrf.mxu0
        %v1268 = vadd.f32 0.0, %v1267
        %v1269 = vpop.f32.mrf.mxu0
        %v1270 = vadd.f32 0.0, %v1269
        %v1271 = vpop.f32.mrf.mxu0
        %v1272 = vpop.f32.mrf.mxu0
        %1273 = vdwg.mxu0
        %1274 = vmatprep.subr.bf16.mxu0 %v990
        %1275 = vmatpush1.bf16.msra.mxu0 %v989
        %1276 = vmatprep.subr.bf16.mxu0 %v986
        %1277 = vmatpush1.bf16.msra.mxu0 %v985
        %1278 = vmatprep.subr.bf16.mxu0 %v982
        %1279 = vmatpush1.bf16.msra.mxu0 %v981
        %1280 = vmatprep.subr.bf16.mxu0 %v978
        %1281 = vmatpush1.bf16.msra.mxu0 %v977
        %1282 = vmatprep.subr.bf16.mxu0 %v974
        %1283 = vmatpush1.bf16.msra.mxu0 %v973
        %1284 = vmatprep.subr.bf16.mxu0 %v970
        %1285 = vmatpush1.bf16.msra.mxu0 %v969
        %1286 = vmatprep.subr.bf16.mxu0 %v966
        %1287 = vmatpush1.bf16.msra.mxu0 %v965
        %1288 = vmatprep.subr.bf16.mxu0 %v962
        %1289 = vmatpush1.bf16.msra.mxu0 %v961
        %1290 = vmatprep.subr.bf16.mxu0 %v1022
        %1291 = vmatpush2.bf16.msra.mxu0 %v1021
        %1292 = vmatprep.subr.bf16.mxu0 %v1018
        %1293 = vmatpush2.bf16.msra.mxu0 %v1017
        %1294 = vmatprep.subr.bf16.mxu0 %v1014
        %1295 = vmatpush2.bf16.msra.mxu0 %v1013
        %1296 = vmatprep.subr.bf16.mxu0 %v1010
        %1297 = vmatpush2.bf16.msra.mxu0 %v1009
        %1298 = vmatprep.subr.bf16.mxu0 %v1006
        %1299 = vmatpush2.bf16.msra.mxu0 %v1005
        %1300 = vmatprep.subr.bf16.mxu0 %v1002
        %1301 = vmatpush2.bf16.msra.mxu0 %v1001
        %1302 = vmatprep.subr.bf16.mxu0 %v998
        %1303 = vmatpush2.bf16.msra.mxu0 %v997
        %1304 = vmatprep.subr.bf16.mxu0 %v994
        %1305 = vmatpush2.bf16.msra.mxu0 %v993
        %1306 = vmatprep.mubr.bf16.mxu0 %v506
        %1307 = vmatmul.mubr.bf16.gmra.mxu0 %v505
        %v1308 = vpop.f32.mrf.mxu0
        %v1309 = vadd.f32 %v1268, %v1308
        %v1310 = vpop.f32.mrf.mxu0
        %v1311 = vadd.f32 %v1270, %v1310
        %v1312 = vpop.f32.mrf.mxu0
        %v1313 = vpop.f32.mrf.mxu0
        %1314 = vdwg.mxu0
        %v1315 = vld [vmem:[#allocation7] sm:$0xff]
        %v1316 = vld [vmem:[#allocation8] sm:$0xff]
        %v1317 = vsub.f32 0.0, %v1227
        %1319 = vrot.lane.b32.xlu0 %v1317, 64
        %v1320 = vpop.permute.xlu0 %1319
        %1323 = vrot.lane.b32.xlu0 %v1227, 64
        %v1324 = vpop.permute.xlu0 %1323
        %vm1326 = vcmask 523264
        %v1327 = vsel %vm1326, %v1320, %v1324
        %v1328 = vmul.f32 %v1227, %v1315
        %v1329 = vmul.f32 %v1327, %v1316
        %v1330 = vadd.f32 %v1328, %v1329
        %v1331 = vmul.f32 %v1330, 0.088388346
        %v1332 = vpack.c.bf16 %v1331, %v1331
        %1333 = vst [vmem:[%s351] sm:$0xf] %v1332
        %v1334 = vsub.f32 0.0, %v1229
        %1336 = vrot.lane.b32.xlu0 %v1334, 64
        %v1337 = vpop.permute.xlu0 %1336
        %1340 = vrot.lane.b32.xlu0 %v1229, 64
        %v1341 = vpop.permute.xlu0 %1340
        %v1343 = vsel %vm1326, %v1337, %v1341
        %v1344 = vmul.f32 %v1229, %v1315
        %v1345 = vmul.f32 %v1343, %v1316
        %v1346 = vadd.f32 %v1344, %v1345
        %v1347 = vmul.f32 %v1346, 0.088388346
        %v1348 = vpack.c.bf16 %v1347, %v1347
        %1349 = vst [vmem:[%s351 + $0x4] sm:$0xf] %v1348
        %v1350 = vsub.f32 0.0, %v1309
        %1352 = vrot.lane.b32.xlu0 %v1350, 64
        %v1353 = vpop.permute.xlu0 %1352
        %1356 = vrot.lane.b32.xlu0 %v1309, 64
        %v1357 = vpop.permute.xlu0 %1356
        %v1359 = vsel %vm1326, %v1353, %v1357
        %v1360 = vmul.f32 %v1309, %v1315
        %v1361 = vmul.f32 %v1359, %v1316
        %v1362 = vadd.f32 %v1360, %v1361
        %v1363 = vpack.c.bf16 %v1362, %v1362
        %1364 = vst [vmem:[%s358] sm:$0xf] %v1363
        %v1365 = vpack.c.bf16 %v1311, %v1311
        %1366 = vst [vmem:[%s365] sm:$0xf] %v1365
        %s1367 = sand.u32 %s155, 1
        %s1368 = scalar_lea.sflag [#allocation4], %s1367
        %s1369 = sand.u32 %s155, 1
        %s1370 = smul.addr %s1369, 8
        %s1371 = scalar_lea.vmem [#allocation10], %s1370
        %s1372 = sand.u32 %s29, 1
        %s1373 = scalar_lea.sflag [#allocation12], %s1372
        %s1374 = sand.u32 %s183, 1
        %s1375 = smul.addr %s1374, 4
        %s1376 = scalar_lea.vmem [#allocation11], %s1375
        %s1377 = sand.u32 %s29, 1
        %s1378 = scalar_lea.sflag [#allocation12], %s1377
        %s1379 = sand.u32 %s211, 1
        %s1380 = smul.addr %s1379, 4
        %s1381 = scalar_lea.vmem [#allocation13], %s1380
        // Predicated region
        $region53: #{tpu_custom_call.1} parent=35 // pred_check
          %p1382 = pneg %p165
        $region54: #{tpu_custom_call.1} parent=35 // pred_check_branch
          %1384 = sbr.rel (%p1382) target = $region56
        $region55: #{tpu_custom_call.1} parent=35 // pred_region
          %s1385 = smul.u32 2, %s33
          %s1387 = ssub.s32 128, 128
          %1388 = vsyncadd %s1368, %s1387
          %s1389 = smul.addr %s34, 4
          %s1390 = sadd.s32 %s1385, %s1389
          %s1391 = smul.addr %s1390, 64
          %s1392 = scalar_lea.hbm %s4, %s1391
          %s1394 = sshll.u32 %s1371, 4
          %s1395 = int_to_ptr.vmem [resolvable:$true] %s1394
          %1397 = dma.vmem_to_hbm [thread:$0]  %s1395, 128, %s1392, %s1368
        $region56: #{tpu_custom_call.1} parent=35 // pred_fallthru
          _
        // Predicated region
        $region57: #{tpu_custom_call.1} parent=35 // pred_check
          %p1398 = pneg %p193
        $region58: #{tpu_custom_call.1} parent=35 // pred_check_branch
          %1400 = sbr.rel (%p1398) target = $region60
        $region59: #{tpu_custom_call.1} parent=35 // pred_region
          %s1402 = ssub.s32 64, 64
          %1403 = vsyncadd %s1373, %s1402
          %s1404 = smul.addr %s34, 2
          %s1405 = sadd.s32 %s33, %s1404
          %s1406 = smul.addr %s1405, 64
          %s1407 = scalar_lea.hbm %s5, %s1406
          %s1409 = sshll.u32 %s1376, 4
          %s1410 = int_to_ptr.vmem [resolvable:$true] %s1409
          %1412 = dma.vmem_to_hbm [thread:$0]  %s1410, 64, %s1407, %s1373
        $region60: #{tpu_custom_call.1} parent=35 // pred_fallthru
          _
        // Predicated region
        $region61: #{tpu_custom_call.1} parent=35 // pred_check
          %p1413 = pneg %p221
        $region62: #{tpu_custom_call.1} parent=35 // pred_check_branch
          %1415 = sbr.rel (%p1413) target = $region64
        $region63: #{tpu_custom_call.1} parent=35 // pred_region
          %s1417 = ssub.s32 64, 64
          %1418 = vsyncadd %s1378, %s1417
          %s1419 = smul.addr %s34, 2
          %s1420 = sadd.s32 %s33, %s1419
          %s1421 = smul.addr %s1420, 64
          %s1422 = scalar_lea.hbm %s6, %s1421
          %s1424 = sshll.u32 %s1381, 4
          %s1425 = int_to_ptr.vmem [resolvable:$true] %s1424
          %1427 = dma.vmem_to_hbm [thread:$0]  %s1425, 64, %s1422, %s1378
        $region64: #{tpu_custom_call.1} parent=35 // pred_fallthru
          _
      $region36: #{tpu_custom_call.1} parent=5 // pred_fallthru
        _
      %p1428 = scmp.le.s32.totalorder 2, %s24
      // Predicated region
      $region65: #{tpu_custom_call.1} parent=5 // pred_check
        %p1429 = pneg %p1428
      $region66: #{tpu_custom_call.1} parent=5 // pred_check_branch
        %1431 = sbr.rel (%p1429) target = $region68
      $region67: #{tpu_custom_call.1} parent=5 // pred_region
        %s1432 = ssub.s32 %s24, 2
        // Predicated region
        $region69: #{tpu_custom_call.1} parent=67 // pred_check
          %p1433 = pneg %p171
        $region70: #{tpu_custom_call.1} parent=67 // pred_check_branch
          %1435 = sbr.rel (%p1433) target = $region72
        $region71: #{tpu_custom_call.1} parent=67 // pred_region
          %s1436 = sand.u32 %s156, 1
          %s1437 = scalar_lea.sflag [#allocation4], %s1436
          %s1438 = sand.u32 %s156, 1
          %s1439 = smul.addr %s1438, 8
          %s1440 = scalar_lea.vmem [#allocation10], %s1439
          %1441 = dma.done %s1437, 128
        $region72: #{tpu_custom_call.1} parent=67 // pred_fallthru
          _
        // Predicated region
        $region73: #{tpu_custom_call.1} parent=67 // pred_check
          %p1442 = pneg %p199
        $region74: #{tpu_custom_call.1} parent=67 // pred_check_branch
          %1444 = sbr.rel (%p1442) target = $region76
        $region75: #{tpu_custom_call.1} parent=67 // pred_region
          %s1445 = sand.u32 %s30, 1
          %s1446 = scalar_lea.sflag [#allocation12], %s1445
          %s1447 = sand.u32 %s184, 1
          %s1448 = smul.addr %s1447, 4
          %s1449 = scalar_lea.vmem [#allocation11], %s1448
          %1450 = dma.done %s1446, 64
        $region76: #{tpu_custom_call.1} parent=67 // pred_fallthru
          _
        // Predicated region
        $region77: #{tpu_custom_call.1} parent=67 // pred_check
          %p1451 = pneg %p227
        $region78: #{tpu_custom_call.1} parent=67 // pred_check_branch
          %1453 = sbr.rel (%p1451) target = $region80
        $region79: #{tpu_custom_call.1} parent=67 // pred_region
          %s1454 = sand.u32 %s30, 1
          %s1455 = scalar_lea.sflag [#allocation12], %s1454
          %s1456 = sand.u32 %s212, 1
          %s1457 = smul.addr %s1456, 4
          %s1458 = scalar_lea.vmem [#allocation13], %s1457
          %1459 = dma.done %s1455, 64
        $region80: #{tpu_custom_call.1} parent=67 // pred_fallthru
          _
      $region68: #{tpu_custom_call.1} parent=5 // pred_fallthru
        _
    $region6: #{tpu_custom_call.1} parent=1 // loop_footer
      %s28 = sadd.s32 1, %s24
    $region7: #{tpu_custom_call.1} parent=1 // loop_footer_branch
      %23 = sbr.rel target = $region3
    $region8: #{tpu_custom_call.1} parent=1 // loop_exit
      _
    %1460 = vsyncpa [#allocation3], 1
    %s1461 = scalar_lea.sflag [#allocation3], 1
    %1462 = vsyncpa %s1461, 1
    %1463 = vsyncpa [#allocation6], 1
    %s1464 = scalar_lea.sflag [#allocation6], 1
    %1465 = vsyncpa %s1464, 1
    %1466 = vsyncpa [#allocation9], 1
    %1467 = vsyncpa [#allocation4], 1
    %s1468 = scalar_lea.sflag [#allocation4], 1
    %1469 = vsyncpa %s1468, 1
    %1470 = vsyncpa [#allocation12], 1
    %s1471 = scalar_lea.sflag [#allocation12], 1
    %1472 = vsyncpa %s1471, 1

</llo_original>
